<compile_context>
chip_gen: v6e
topology: v6e:2x2x1
jax: 0.10.0
libtpu: 0.0.40
codegen_flags: <defaults>
</compile_context>

<pallas_src>
import jax
import jax.numpy as jnp
from jax.experimental import pallas as pl
from jax.experimental.pallas import tpu as pltpu


def _up_fused_kernel(x1_ref, x2_ref, w0_ref, w1_ref, b_ref, e0_ref, e1_ref, o_ref):
    """Fused step: tap matmuls + bias, interleave/pad placement via expansion
    matmuls, residual add, single dense store.  All refs are 2-D views
    (batch dim squeezed via `None` in the BlockSpecs)."""
    f32 = jnp.float32
    x1 = x1_ref[...]                                   # (Cin, TL1)  lane = length
    b = b_ref[...]                                     # (C2, 1)     zero on pad channels
    # Tap matmuls; rows of w*/b outside [c_off, c_off+Cout) are zero -> channel pad.
    y0 = jnp.dot(w0_ref[...], x1, preferred_element_type=f32) + b   # (C2, TL1)
    y1 = jnp.dot(w1_ref[...], x1, preferred_element_type=f32) + b
    # Expansion matmuls: place tap-k result at output lane 2*l + k + l_off.
    # Columns outside the conv-covered range are all zero -> length pad.
    up = (jnp.dot(y0, e0_ref[...], preferred_element_type=f32)
          + jnp.dot(y1, e1_ref[...], preferred_element_type=f32))   # (C2, TLo)
    o_ref[...] = (x2_ref[...].astype(f32) + up).astype(o_ref.dtype)


def up_forward(x1, x2, weight, bias):
    """x1: (N, Cin, L1), x2: (N, C2, L2), weight: (Cin, Cout, 2) (ConvTranspose1d
    layout), bias: (Cout,).  Returns (N, C2, L2) = x2 + pad(conv_transpose(x1))."""
    N, Cin, L1 = x1.shape
    N2, C2, L2 = x2.shape
    assert N == N2
    Cout = weight.shape[1]

    diffY = C2 - Cout
    diffX = L2 - 2 * L1
    assert diffX >= 0 and diffY >= 0  # TODO(synk): negative pads (cropping) unsupported
    c_off = diffY // 2
    l_off = diffX // 2

    # ---- length tiling (aligned tiles only possible when there is no length pad) ----
    TL1 = L1
    if diffX == 0:
        for cand in (512, 256, 128):
            if L1 % cand == 0 and L1 // cand > 1:
                TL1 = cand
                break
    T = L1 // TL1
    TLo = 2 * TL1 if T > 1 else L2          # T > 1 implies diffX == 0, so 2*TL1 | L2

    # ---- constant operands: both pads folded into weights / bias / E matrices ----
    w_t = jnp.transpose(weight, (2, 1, 0))                              # (2, Cout, Cin)
    w_pad = jnp.pad(w_t, ((0, 0), (c_off, diffY - c_off), (0, 0)))      # (2, C2, Cin)
    b_pad = jnp.pad(bias.astype(jnp.float32), (c_off, diffY - c_off)).reshape(C2, 1)

    l_idx = jnp.arange(TL1, dtype=jnp.int32)[:, None]
    p_idx = jnp.arange(TLo, dtype=jnp.int32)[None, :]
    e0 = (p_idx == 2 * l_idx + l_off).astype(jnp.float32)               # (TL1, TLo)
    e1 = (p_idx == 2 * l_idx + 1 + l_off).astype(jnp.float32)

    out_dtype = jnp.result_type(x1.dtype, weight.dtype, x2.dtype)
    osz = jnp.dtype(out_dtype).itemsize
    isz = lambda a: jnp.dtype(a.dtype).itemsize

    # ---- VMEM budget (double-buffered pipelined operands), clamped under v7x 64 MiB ----
    blk_bytes = (2 * Cin * TL1 * isz(x1)
                 + 2 * C2 * TLo * isz(x2)
                 + 2 * C2 * TLo * osz
                 + 2 * TL1 * TLo * 4                    # E0 + E1 (resident)
                 + 2 * C2 * Cin * isz(weight) + C2 * 4)
    vmem_limit = int(min(max(int(blk_bytes * 1.25), 32 * 1024 * 1024), 48 * 1024 * 1024))

    flops = N * T * (4 * C2 * Cin * TL1 + 4 * C2 * TL1 * TLo)
    bytes_accessed = (x1.size * isz(x1) + x2.size * isz(x2) + N * C2 * L2 * osz)

    out = pl.pallas_call(
        _up_fused_kernel,
        out_shape=jax.ShapeDtypeStruct((N, C2, L2), out_dtype),
        grid=(N, T),
        in_specs=[
            pl.BlockSpec((None, Cin, TL1), lambda n, t: (n, 0, t)),   # x1 tile
            pl.BlockSpec((None, C2, TLo), lambda n, t: (n, 0, t)),    # x2 tile
            pl.BlockSpec((C2, Cin), lambda n, t: (0, 0)),             # w tap 0 (resident)
            pl.BlockSpec((C2, Cin), lambda n, t: (0, 0)),             # w tap 1 (resident)
            pl.BlockSpec((C2, 1), lambda n, t: (0, 0)),               # bias (resident)
            pl.BlockSpec((TL1, TLo), lambda n, t: (0, 0)),            # E0 (resident)
            pl.BlockSpec((TL1, TLo), lambda n, t: (0, 0)),            # E1 (resident)
        ],
        out_specs=pl.BlockSpec((None, C2, TLo), lambda n, t: (n, 0, t)),
        compiler_params=pltpu.CompilerParams(
            dimension_semantics=("parallel", "parallel"),
            vmem_limit_bytes=vmem_limit,
        ),
        cost_estimate=pl.CostEstimate(
            flops=int(flops), transcendentals=0, bytes_accessed=int(bytes_accessed)),
    )(x1, x2, w_pad[0], w_pad[1], b_pad, e0, e1)
    return out


# ---------------- Pure-JAX reference (for correctness check) -----------------
def up_forward_ref(x1_ncl, x2_ncl, weight, bias):
    y = jnp.einsum("ncl,cok->nolk", x1_ncl, weight) + bias[None, :, None, None]
    N, Cout, L1, _ = y.shape
    y = y.reshape(N, Cout, 2 * L1)
    dY = x2_ncl.shape[1] - y.shape[1]
    dX = x2_ncl.shape[2] - y.shape[2]
    y = jnp.pad(y, ((0, 0), (dY // 2, dY - dY // 2), (dX // 2, dX - dX // 2)))
    return x2_ncl + y


if __name__ == "__main__":
    key = jax.random.PRNGKey(0)
    up_jit = jax.jit(up_forward)

    # (in_ch, N, L1, C2, L2): exercise the zero-pad case, odd length offset,
    # channel padding with odd L2, and the multi-length-tile (lane-dense) path.
    configs = [
        (4, 2, 8, 2, 16),     # diffX=0, diffY=0               -> single tile
        (4, 2, 8, 2, 18),     # diffX=2 (odd l_off)            -> single tile, length pad
        (4, 2, 8, 5, 21),     # diffX=5, diffY=3, odd L2       -> channel + length pad
        (8, 2, 256, 4, 512),  # diffX=0, diffY=0, L1=256       -> tiled grid (N, 2), TL1=128
    ]
    for i, (in_ch, N, L1, C2, L2) in enumerate(configs):
        out_ch = in_ch // 2
        k_w, k_b, k_x1, k_x2, key = jax.random.split(key, 5)
        weight = jax.random.normal(k_w, (in_ch, out_ch, 2), dtype=jnp.float32) * 0.1
        bias = jax.random.normal(k_b, (out_ch,), dtype=jnp.float32) * 0.1
        x1 = jax.random.normal(k_x1, (N, in_ch, L1), dtype=jnp.float32)
        x2 = jax.random.normal(k_x2, (N, C2, L2), dtype=jnp.float32)

        out = jax.block_until_ready(up_jit(x1, x2, weight, bias))
        ref = up_forward_ref(x1, x2, weight, bias)
        assert out.shape == ref.shape == (N, C2, L2), f"shape mismatch in config {i}"
        assert jnp.allclose(out, ref, atol=1e-5, rtol=1e-5), f"value mismatch in config {i}"

    print("KERNEL_OK")
</pallas_src>

<mosaic_0001>
module attributes {stable_mosaic.version = 11 : i64} {
  func.func @_up_fused_kernel(%arg0: i32, %arg1: i32, %arg2: memref<1x4x8xf32, #tpu.memory_space<vmem>>, %arg3: memref<1x2x16xf32, #tpu.memory_space<vmem>>, %arg4: memref<2x4xf32, #tpu.memory_space<vmem>>, %arg5: memref<2x4xf32, #tpu.memory_space<vmem>>, %arg6: memref<2x1xf32, #tpu.memory_space<vmem>>, %arg7: memref<8x16xf32, #tpu.memory_space<vmem>>, %arg8: memref<8x16xf32, #tpu.memory_space<vmem>>, %arg9: memref<1x2x16xf32, #tpu.memory_space<vmem>>) attributes {dimension_semantics = [#tpu.dimension_semantics<parallel>, #tpu.dimension_semantics<parallel>], iteration_bounds = array<i64: 2, 1>, scalar_prefetch = 0 : i64, scratch_operands = 0 : i64, tpu.core_type = #tpu.core_type<tc>, window_params = [{transform_indices = @transform_0, window_bounds = array<i64: 1, 4, 8>}, {transform_indices = @transform_1, window_bounds = array<i64: 1, 2, 16>}, {pipeline_mode = #tpu.pipeline_mode<synchronous>, transform_indices = @transform_2, window_bounds = array<i64: 2, 4>}, {pipeline_mode = #tpu.pipeline_mode<synchronous>, transform_indices = @transform_3, window_bounds = array<i64: 2, 4>}, {pipeline_mode = #tpu.pipeline_mode<synchronous>, transform_indices = @transform_4, window_bounds = array<i64: 2, 1>}, {pipeline_mode = #tpu.pipeline_mode<synchronous>, transform_indices = @transform_5, window_bounds = array<i64: 8, 16>}, {pipeline_mode = #tpu.pipeline_mode<synchronous>, transform_indices = @transform_6, window_bounds = array<i64: 8, 16>}, {transform_indices = @transform_7, window_bounds = array<i64: 1, 2, 16>}]} {
    %c0 = arith.constant 0 : index
    %c0_0 = arith.constant 0 : index
    %c0_1 = arith.constant 0 : index
    %0 = vector.load %arg2[%c0, %c0_0, %c0_1] : memref<1x4x8xf32, #tpu.memory_space<vmem>>, vector<1x4x8xf32>
    %1 = vector.shape_cast %0 : vector<1x4x8xf32> to vector<4x8xf32>
    %c0_2 = arith.constant 0 : index
    %c0_3 = arith.constant 0 : index
    %2 = vector.load %arg6[%c0_2, %c0_3] : memref<2x1xf32, #tpu.memory_space<vmem>>, vector<2x1xf32>
    %c0_4 = arith.constant 0 : index
    %c0_5 = arith.constant 0 : index
    %3 = vector.load %arg4[%c0_4, %c0_5] : memref<2x4xf32, #tpu.memory_space<vmem>>, vector<2x4xf32>
    %cst = arith.constant dense<0.000000e+00> : vector<2x8xf32>
    %4 = tpu.matmul %3, %1, %cst {dimension_numbers = #tpu.dot_dimension_numbers<[1], [0], [0], [1], [0, 0, 1, 1], [], []>} : vector<2x4xf32>, vector<4x8xf32>, vector<2x8xf32> -> vector<2x8xf32>
    %5 = vector.broadcast %2 : vector<2x1xf32> to vector<2x8xf32>
    %6 = arith.addf %4, %5 : vector<2x8xf32>
    %c0_6 = arith.constant 0 : index
    %c0_7 = arith.constant 0 : index
    %7 = vector.load %arg5[%c0_6, %c0_7] : memref<2x4xf32, #tpu.memory_space<vmem>>, vector<2x4xf32>
    %cst_8 = arith.constant dense<0.000000e+00> : vector<2x8xf32>
    %8 = tpu.matmul %7, %1, %cst_8 {dimension_numbers = #tpu.dot_dimension_numbers<[1], [0], [0], [1], [0, 0, 1, 1], [], []>} : vector<2x4xf32>, vector<4x8xf32>, vector<2x8xf32> -> vector<2x8xf32>
    %9 = vector.broadcast %2 : vector<2x1xf32> to vector<2x8xf32>
    %10 = arith.addf %8, %9 : vector<2x8xf32>
    %c0_9 = arith.constant 0 : index
    %c0_10 = arith.constant 0 : index
    %11 = vector.load %arg7[%c0_9, %c0_10] : memref<8x16xf32, #tpu.memory_space<vmem>>, vector<8x16xf32>
    %cst_11 = arith.constant dense<0.000000e+00> : vector<2x16xf32>
    %12 = tpu.matmul %6, %11, %cst_11 {dimension_numbers = #tpu.dot_dimension_numbers<[1], [0], [0], [1], [0, 0, 1, 1], [], []>} : vector<2x8xf32>, vector<8x16xf32>, vector<2x16xf32> -> vector<2x16xf32>
    %c0_12 = arith.constant 0 : index
    %c0_13 = arith.constant 0 : index
    %13 = vector.load %arg8[%c0_12, %c0_13] : memref<8x16xf32, #tpu.memory_space<vmem>>, vector<8x16xf32>
    %cst_14 = arith.constant dense<0.000000e+00> : vector<2x16xf32>
    %14 = tpu.matmul %10, %13, %cst_14 {dimension_numbers = #tpu.dot_dimension_numbers<[1], [0], [0], [1], [0, 0, 1, 1], [], []>} : vector<2x8xf32>, vector<8x16xf32>, vector<2x16xf32> -> vector<2x16xf32>
    %15 = arith.addf %12, %14 : vector<2x16xf32>
    %c0_15 = arith.constant 0 : index
    %c0_16 = arith.constant 0 : index
    %c0_17 = arith.constant 0 : index
    %16 = vector.load %arg3[%c0_15, %c0_16, %c0_17] : memref<1x2x16xf32, #tpu.memory_space<vmem>>, vector<1x2x16xf32>
    %17 = vector.shape_cast %16 : vector<1x2x16xf32> to vector<2x16xf32>
    %18 = arith.addf %17, %15 : vector<2x16xf32>
    %c0_18 = arith.constant 0 : index
    %c0_19 = arith.constant 0 : index
    %c0_20 = arith.constant 0 : index
    %19 = vector.load %arg9[%c0_18, %c0_19, %c0_20] : memref<1x2x16xf32, #tpu.memory_space<vmem>>, vector<1x2x16xf32>
    %20 = vector.shape_cast %19 : vector<1x2x16xf32> to vector<2x16xf32>
    %21 = vector.shape_cast %18 : vector<2x16xf32> to vector<1x2x16xf32>
    tpu.vector_store %arg9[%c0_18, %c0_19, %c0_20], %21 {strides = array<i32>} : memref<1x2x16xf32, #tpu.memory_space<vmem>>, vector<1x2x16xf32>,
    return
  }
  func.func @transform_0(%arg0: i32, %arg1: i32) -> (i32, i32, i32) {
    %c0_i32 = arith.constant 0 : i32
    %c0_i32_0 = arith.constant 0 : i32
    return %arg0, %c0_i32, %arg1 : i32, i32, i32
  }
  func.func @transform_1(%arg0: i32, %arg1: i32) -> (i32, i32, i32) {
    %c0_i32 = arith.constant 0 : i32
    %c0_i32_0 = arith.constant 0 : i32
    return %arg0, %c0_i32, %arg1 : i32, i32, i32
  }
  func.func @transform_2(%arg0: i32, %arg1: i32) -> (i32, i32) {
    %c0_i32 = arith.constant 0 : i32
    %c0_i32_0 = arith.constant 0 : i32
    %c0_i32_1 = arith.constant 0 : i32
    return %c0_i32, %c0_i32_0 : i32, i32
  }
  func.func @transform_3(%arg0: i32, %arg1: i32) -> (i32, i32) {
    %c0_i32 = arith.constant 0 : i32
    %c0_i32_0 = arith.constant 0 : i32
    %c0_i32_1 = arith.constant 0 : i32
    return %c0_i32, %c0_i32_0 : i32, i32
  }
  func.func @transform_4(%arg0: i32, %arg1: i32) -> (i32, i32) {
    %c0_i32 = arith.constant 0 : i32
    %c0_i32_0 = arith.constant 0 : i32
    %c0_i32_1 = arith.constant 0 : i32
    return %c0_i32, %c0_i32_0 : i32, i32
  }
  func.func @transform_5(%arg0: i32, %arg1: i32) -> (i32, i32) {
    %c0_i32 = arith.constant 0 : i32
    %c0_i32_0 = arith.constant 0 : i32
    %c0_i32_1 = arith.constant 0 : i32
    return %c0_i32, %c0_i32_0 : i32, i32
  }
  func.func @transform_6(%arg0: i32, %arg1: i32) -> (i32, i32) {
    %c0_i32 = arith.constant 0 : i32
    %c0_i32_0 = arith.constant 0 : i32
    %c0_i32_1 = arith.constant 0 : i32
    return %c0_i32, %c0_i32_0 : i32, i32
  }
  func.func @transform_7(%arg0: i32, %arg1: i32) -> (i32, i32, i32) {
    %c0_i32 = arith.constant 0 : i32
    %c0_i32_0 = arith.constant 0 : i32
    return %arg0, %c0_i32, %arg1 : i32, i32, i32
  }
}

</mosaic_0001>

<llo_original>
// kernel: up_forward.1
$region0: #{up_forward.1}
  #allocation0 [shape = 'u32[]', space=smem, size = 0x4, offset = 0x4, fixed_abs, tag = 'smem constant byte address 0x4 - core index']
  #allocation1 [shape = 'u32[144,128]{1,0:T(1,128)}', space=vmem, size = 0x12000, scoped, tag = 'internal scratch']
  %s0 = inlined_call_operand.vmem [shape: f32[2,4,8], index: 0, kind: input, shape index: {}]
  %s1 = inlined_call_operand.vmem [shape: f32[2,2,16], index: 1, kind: input, shape index: {}]
  %s2 = inlined_call_operand.vmem [shape: f32[2,4], index: 2, kind: input, shape index: {}]
  %s3 = inlined_call_operand.vmem [shape: f32[2,4], index: 3, kind: input, shape index: {}]
  %s4 = inlined_call_operand.vmem [shape: f32[2,1], index: 4, kind: input, shape index: {}]
  %s5 = inlined_call_operand.vmem [shape: f32[8,16], index: 5, kind: input, shape index: {}]
  %s6 = inlined_call_operand.vmem [shape: f32[8,16], index: 6, kind: input, shape index: {}]
  %s7 = inlined_call_operand.hbm [shape: f32[2,2,16], index: 7, kind: output, shape index: {}]
  %s8 = sld [smem:[#allocation0]]
  $region61: #{up_forward.1} parent=0
    _
  %s10 = ssub.s32 1, %s8
  %s11 = scalar_select 0, %s10, %s8
  $region1: #{up_forward.1} parent=0
    #allocation2 [shape = 'u8[2048]{0}', space=vmem, size = 0x800, scoped, tag = 'output window, operand 0']
    #allocation3 [shape = 's32[2]{0}', space=sflag, size = 0x8, scoped, tag = 'scoped memory for up_forward.1']
    %12 = vsyncpa [#allocation3], 0
    %s13 = scalar_lea.sflag [#allocation3], 1
    %14 = vsyncpa %s13, 0
    loop: start=0, step=1, limit=4
    $region2: #{up_forward.1} parent=1 // loop_pre_header
      _
    $region3: #{up_forward.1} parent=1 // loop_header
      %s16 = sphi 0, %s20
      %p17 = scmp.ge.s32.totalorder %s16, 4
      %s23 = sphi 0, %s35
      %s24 = sphi 0, %s31
      %s25 = sphi 0, %s23
      %s26 = sphi 0, %s24
      %s27 = sphi 0, %s25
      %s28 = sphi 0, %s26
      %s40 = sphi 0, %s42
      %s43 = sphi 0, %s40
      %s44 = sphi 0, %s43
      %s60 = sphi 0, %s44
      %s68 = sphi 0, %s70
      %s71 = sphi 0, %s68
      %s72 = sphi 0, %s71
      %s88 = sphi 0, %s72
      %s92 = sphi 0, %s92
      %s94 = sphi 0, %s92
      %s95 = sphi 0, %s94
      %s109 = sphi 0, %s95
      %s113 = sphi 0, %s113
      %s115 = sphi 0, %s113
      %s116 = sphi 0, %s115
      %s130 = sphi 0, %s116
      %s134 = sphi 0, %s134
      %s136 = sphi 0, %s134
      %s137 = sphi 0, %s136
      %s151 = sphi 0, %s137
      %s155 = sphi 0, %s155
      %s157 = sphi 0, %s155
      %s158 = sphi 0, %s157
      %s172 = sphi 0, %s158
      %s176 = sphi 0, %s176
      %s178 = sphi 0, %s176
      %s179 = sphi 0, %s178
      %s193 = sphi 0, %s179
      %s201 = sphi 0, %s203
      %s204 = sphi 0, %s201
      %s205 = sphi 0, %s204
      %s221 = sphi 0, %s205
    $region4: #{up_forward.1} parent=1 // loop_header_branch
      %19 = sbr.rel (%p17) target = $region8
    $region5: #{up_forward.1} parent=1 // loop_body
      %s21 = ssub.s32 %s16, 1
      %s22 = ssub.s32 %s16, 2
      %s29 = sadd.s32 1, %s24
      %p30 = scmp.ge.s32.totalorder %s29, 1
      %s31 = scalar_select %p30, 0, %s29
      %s32 = sadd.s32 1, %s23
      %s33 = scalar_select %p30, %s32, %s23
      %p34 = scmp.ge.s32.totalorder %s33, 2
      %s35 = scalar_select %p34, 0, %s33
      %s36 = ssub.s32 %s23, %s35
      %s37 = ssub.s32 %s24, %s31
      %s38 = sor.u32 %s36, %s37
      %p39 = scmp.eq.s32.totalorder %s38, 0
      %s41 = sadd.s32 %s40, 1
      %s42 = scalar_select %p39, %s40, %s41
      %p45 = pneg %p39
      %p46 = scmp.eq.s32.totalorder %s16, 1
      %p47 = por %p45, %p46
      %p48 = scmp.ne.s32.totalorder %s40, %s43
      %p49 = scmp.eq.s32.totalorder %s16, 0
      %p50 = por %p48, %p49
      %p51 = scmp.ne.s32.totalorder %s40, %s43
      %p52 = scmp.eq.s32.totalorder %s21, 1
      %p53 = por %p51, %p52
      %p54 = scmp.ne.s32.totalorder %s43, %s44
      %p55 = scmp.eq.s32.totalorder %s21, 0
      %p56 = por %p54, %p55
      %p57 = scmp.ne.s32.totalorder %s43, %s44
      %p58 = scmp.eq.s32.totalorder %s22, 1
      %p59 = por %p57, %p58
      %p61 = scmp.ne.s32.totalorder %s44, %s60
      %p62 = scmp.eq.s32.totalorder %s22, 0
      %p63 = por %p61, %p62
      %s64 = ssub.s32 %s23, %s35
      %s65 = ssub.s32 %s24, %s31
      %s66 = sor.u32 %s64, %s65
      %p67 = scmp.eq.s32.totalorder %s66, 0
      %s69 = sadd.s32 %s68, 1
      %s70 = scalar_select %p67, %s68, %s69
      %p73 = pneg %p67
      %p74 = scmp.eq.s32.totalorder %s16, 1
      %p75 = por %p73, %p74
      %p76 = scmp.ne.s32.totalorder %s68, %s71
      %p77 = scmp.eq.s32.totalorder %s16, 0
      %p78 = por %p76, %p77
      %p79 = scmp.ne.s32.totalorder %s68, %s71
      %p80 = scmp.eq.s32.totalorder %s21, 1
      %p81 = por %p79, %p80
      %p82 = scmp.ne.s32.totalorder %s71, %s72
      %p83 = scmp.eq.s32.totalorder %s21, 0
      %p84 = por %p82, %p83
      %p85 = scmp.ne.s32.totalorder %s71, %s72
      %p86 = scmp.eq.s32.totalorder %s22, 1
      %p87 = por %p85, %p86
      %p89 = scmp.ne.s32.totalorder %s72, %s88
      %p90 = scmp.eq.s32.totalorder %s22, 0
      %p91 = por %p89, %p90
      %s93 = sadd.s32 %s92, 1
      %p96 = scmp.eq.s32.totalorder %s16, 1
      %p97 = scmp.ne.s32.totalorder %s92, %s94
      %p98 = scmp.eq.s32.totalorder %s16, 0
      %p99 = por %p97, %p98
      %p100 = scmp.ne.s32.totalorder %s92, %s94
      %p101 = scmp.eq.s32.totalorder %s21, 1
      %p102 = por %p100, %p101
      %p103 = scmp.ne.s32.totalorder %s94, %s95
      %p104 = scmp.eq.s32.totalorder %s21, 0
      %p105 = por %p103, %p104
      %p106 = scmp.ne.s32.totalorder %s94, %s95
      %p107 = scmp.eq.s32.totalorder %s22, 1
      %p108 = por %p106, %p107
      %p110 = scmp.ne.s32.totalorder %s95, %s109
      %p111 = scmp.eq.s32.totalorder %s22, 0
      %p112 = por %p110, %p111
      %s114 = sadd.s32 %s113, 1
      %p117 = scmp.eq.s32.totalorder %s16, 1
      %p118 = scmp.ne.s32.totalorder %s113, %s115
      %p119 = scmp.eq.s32.totalorder %s16, 0
      %p120 = por %p118, %p119
      %p121 = scmp.ne.s32.totalorder %s113, %s115
      %p122 = scmp.eq.s32.totalorder %s21, 1
      %p123 = por %p121, %p122
      %p124 = scmp.ne.s32.totalorder %s115, %s116
      %p125 = scmp.eq.s32.totalorder %s21, 0
      %p126 = por %p124, %p125
      %p127 = scmp.ne.s32.totalorder %s115, %s116
      %p128 = scmp.eq.s32.totalorder %s22, 1
      %p129 = por %p127, %p128
      %p131 = scmp.ne.s32.totalorder %s116, %s130
      %p132 = scmp.eq.s32.totalorder %s22, 0
      %p133 = por %p131, %p132
      %s135 = sadd.s32 %s134, 1
      %p138 = scmp.eq.s32.totalorder %s16, 1
      %p139 = scmp.ne.s32.totalorder %s134, %s136
      %p140 = scmp.eq.s32.totalorder %s16, 0
      %p141 = por %p139, %p140
      %p142 = scmp.ne.s32.totalorder %s134, %s136
      %p143 = scmp.eq.s32.totalorder %s21, 1
      %p144 = por %p142, %p143
      %p145 = scmp.ne.s32.totalorder %s136, %s137
      %p146 = scmp.eq.s32.totalorder %s21, 0
      %p147 = por %p145, %p146
      %p148 = scmp.ne.s32.totalorder %s136, %s137
      %p149 = scmp.eq.s32.totalorder %s22, 1
      %p150 = por %p148, %p149
      %p152 = scmp.ne.s32.totalorder %s137, %s151
      %p153 = scmp.eq.s32.totalorder %s22, 0
      %p154 = por %p152, %p153
      %s156 = sadd.s32 %s155, 1
      %p159 = scmp.eq.s32.totalorder %s16, 1
      %p160 = scmp.ne.s32.totalorder %s155, %s157
      %p161 = scmp.eq.s32.totalorder %s16, 0
      %p162 = por %p160, %p161
      %p163 = scmp.ne.s32.totalorder %s155, %s157
      %p164 = scmp.eq.s32.totalorder %s21, 1
      %p165 = por %p163, %p164
      %p166 = scmp.ne.s32.totalorder %s157, %s158
      %p167 = scmp.eq.s32.totalorder %s21, 0
      %p168 = por %p166, %p167
      %p169 = scmp.ne.s32.totalorder %s157, %s158
      %p170 = scmp.eq.s32.totalorder %s22, 1
      %p171 = por %p169, %p170
      %p173 = scmp.ne.s32.totalorder %s158, %s172
      %p174 = scmp.eq.s32.totalorder %s22, 0
      %p175 = por %p173, %p174
      %s177 = sadd.s32 %s176, 1
      %p180 = scmp.eq.s32.totalorder %s16, 1
      %p181 = scmp.ne.s32.totalorder %s176, %s178
      %p182 = scmp.eq.s32.totalorder %s16, 0
      %p183 = por %p181, %p182
      %p184 = scmp.ne.s32.totalorder %s176, %s178
      %p185 = scmp.eq.s32.totalorder %s21, 1
      %p186 = por %p184, %p185
      %p187 = scmp.ne.s32.totalorder %s178, %s179
      %p188 = scmp.eq.s32.totalorder %s21, 0
      %p189 = por %p187, %p188
      %p190 = scmp.ne.s32.totalorder %s178, %s179
      %p191 = scmp.eq.s32.totalorder %s22, 1
      %p192 = por %p190, %p191
      %p194 = scmp.ne.s32.totalorder %s179, %s193
      %p195 = scmp.eq.s32.totalorder %s22, 0
      %p196 = por %p194, %p195
      %s197 = ssub.s32 %s23, %s35
      %s198 = ssub.s32 %s24, %s31
      %s199 = sor.u32 %s197, %s198
      %p200 = scmp.eq.s32.totalorder %s199, 0
      %s202 = sadd.s32 %s201, 1
      %s203 = scalar_select %p200, %s201, %s202
      %p206 = pneg %p200
      %p207 = scmp.eq.s32.totalorder %s16, 1
      %p208 = por %p206, %p207
      %p209 = scmp.ne.s32.totalorder %s201, %s204
      %p210 = scmp.eq.s32.totalorder %s16, 0
      %p211 = por %p209, %p210
      %p212 = scmp.ne.s32.totalorder %s201, %s204
      %p213 = scmp.eq.s32.totalorder %s21, 1
      %p214 = por %p212, %p213
      %p215 = scmp.ne.s32.totalorder %s204, %s205
      %p216 = scmp.eq.s32.totalorder %s21, 0
      %p217 = por %p215, %p216
      %p218 = scmp.ne.s32.totalorder %s204, %s205
      %p219 = scmp.eq.s32.totalorder %s22, 1
      %p220 = por %p218, %p219
      %p222 = scmp.ne.s32.totalorder %s205, %s221
      %p223 = scmp.eq.s32.totalorder %s22, 0
      %p224 = por %p222, %p223
      %p225 = scmp.le.s32.totalorder 1, %s16
      %p226 = scmp.lt.s32.totalorder %s16, 3
      %p227 = pnand %p225, %p226
      %p228 = pneg %p227
      // Predicated region
      $region9: #{up_forward.1} parent=5 // pred_check
        _
      $region10: #{up_forward.1} parent=5 // pred_check_branch
        %230 = sbr.rel (%p227) target = $region12
      $region11: #{up_forward.1} parent=5 // pred_region
        %s231 = ssub.s32 %s16, 1
        // Predicated region
        $region13: #{up_forward.1} parent=11 // pred_check
          %p232 = pneg %p105
        $region14: #{up_forward.1} parent=11 // pred_check_branch
          %234 = sbr.rel (%p232) target = $region16
        $region15: #{up_forward.1} parent=11 // pred_region
          _
        $region16: #{up_forward.1} parent=11 // pred_fallthru
          _
        // Predicated region
        $region17: #{up_forward.1} parent=11 // pred_check
          %p235 = pneg %p126
        $region18: #{up_forward.1} parent=11 // pred_check_branch
          %237 = sbr.rel (%p235) target = $region20
        $region19: #{up_forward.1} parent=11 // pred_region
          _
        $region20: #{up_forward.1} parent=11 // pred_fallthru
          _
        // Predicated region
        $region21: #{up_forward.1} parent=11 // pred_check
          %p238 = pneg %p147
        $region22: #{up_forward.1} parent=11 // pred_check_branch
          %240 = sbr.rel (%p238) target = $region24
        $region23: #{up_forward.1} parent=11 // pred_region
          _
        $region24: #{up_forward.1} parent=11 // pred_fallthru
          _
        // Predicated region
        $region25: #{up_forward.1} parent=11 // pred_check
          %p241 = pneg %p168
        $region26: #{up_forward.1} parent=11 // pred_check_branch
          %243 = sbr.rel (%p241) target = $region28
        $region27: #{up_forward.1} parent=11 // pred_region
          _
        $region28: #{up_forward.1} parent=11 // pred_fallthru
          _
        // Predicated region
        $region29: #{up_forward.1} parent=11 // pred_check
          %p244 = pneg %p189
        $region30: #{up_forward.1} parent=11 // pred_check_branch
          %246 = sbr.rel (%p244) target = $region32
        $region31: #{up_forward.1} parent=11 // pred_region
          _
        $region32: #{up_forward.1} parent=11 // pred_fallthru
          _
      $region12: #{up_forward.1} parent=5 // pred_fallthru
        _
      %p247 = scmp.lt.s32.totalorder %s16, 2
      // Predicated region
      $region33: #{up_forward.1} parent=5 // pred_check
        %p248 = pneg %p247
      $region34: #{up_forward.1} parent=5 // pred_check_branch
        %250 = sbr.rel (%p248) target = $region36
      $region35: #{up_forward.1} parent=5 // pred_region
        // Predicated region
        $region37: #{up_forward.1} parent=35 // pred_check
          %p251 = pneg %p50
        $region38: #{up_forward.1} parent=35 // pred_check_branch
          %253 = sbr.rel (%p251) target = $region40
        $region39: #{up_forward.1} parent=35 // pred_region
          %p254 = scmp.lt.s32.totalorder %s23, 1
          %s255 = scalar_select %p254, %s23, 1
          %p256 = scmp.lt.s32.totalorder %s24, 0
          %s257 = scalar_select %p256, %s24, 0
          %s258 = sadd.s32 %s257, %s255
          %s259 = smul.addr %s258, 4
          %s260 = scalar_lea.vmem %s0, %s259
        $region40: #{up_forward.1} parent=35 // pred_fallthru
          _
        // Predicated region
        $region41: #{up_forward.1} parent=35 // pred_check
          %p261 = pneg %p78
        $region42: #{up_forward.1} parent=35 // pred_check_branch
          %263 = sbr.rel (%p261) target = $region44
        $region43: #{up_forward.1} parent=35 // pred_region
          %p264 = scmp.lt.s32.totalorder %s23, 1
          %s265 = scalar_select %p264, %s23, 1
          %p266 = scmp.lt.s32.totalorder %s24, 0
          %s267 = scalar_select %p266, %s24, 0
          %s268 = sadd.s32 %s267, %s265
          %s269 = smul.addr %s268, 2
          %s270 = scalar_lea.vmem %s1, %s269
        $region44: #{up_forward.1} parent=35 // pred_fallthru
          _
      $region36: #{up_forward.1} parent=5 // pred_fallthru
        _
      %p271 = scmp.le.s32.totalorder 1, %s16
      %p272 = scmp.lt.s32.totalorder %s16, 3
      %p273 = pnand %p271, %p272
      %p274 = pneg %p273
      // Predicated region
      $region45: #{up_forward.1} parent=5 // pred_check
        _
      $region46: #{up_forward.1} parent=5 // pred_check_branch
        %276 = sbr.rel (%p273) target = $region48
      $region47: #{up_forward.1} parent=5 // pred_region
        %s277 = ssub.s32 %s16, 1
        %p278 = scmp.lt.s32.totalorder %s25, 1
        %s279 = scalar_select %p278, %s25, 1
        %p280 = scmp.lt.s32.totalorder %s26, 0
        %s281 = scalar_select %p280, %s26, 0
        %s282 = sadd.s32 %s281, %s279
        %s283 = smul.addr %s282, 4
        %s284 = scalar_lea.vmem %s0, %s283
        %p285 = pneg %p56
        %p286 = pneg %p53
        %p287 = scmp.lt.s32.totalorder %s25, 1
        %s288 = scalar_select %p287, %s25, 1
        %p289 = scmp.lt.s32.totalorder %s26, 0
        %s290 = scalar_select %p289, %s26, 0
        %s291 = sadd.s32 %s290, %s288
        %s292 = smul.addr %s291, 2
        %s293 = scalar_lea.vmem %s1, %s292
        %p294 = pneg %p84
        %p295 = pneg %p81
        %p296 = pneg %p105
        %p297 = pneg %p102
        %p298 = pneg %p126
        %p299 = pneg %p123
        %p300 = pneg %p147
        %p301 = pneg %p144
        %p302 = pneg %p168
        %p303 = pneg %p165
        %p304 = pneg %p189
        %p305 = pneg %p186
        %p306 = pneg %p217
        %p307 = pneg %p214
        %s308 = sand.u32 %s204, 1
        %s309 = scalar_lea.sflag [#allocation3], %s308
        %s310 = sand.u32 %s204, 1
        %s311 = smul.addr %s310, 2
        %s312 = scalar_lea.vmem [#allocation2], %s311
        %p313 = scmp.lt.s32.totalorder %s25, 1
        %s314 = scalar_select %p313, %s25, 1
        %p315 = scmp.lt.s32.totalorder %s26, 0
        %s316 = scalar_select %p315, %s26, 0
        %s317 = sadd.s32 %s316, %s314
        %s318 = smul.addr %s317, 4
        %s319 = scalar_lea.vmem %s0, %s318
        %p320 = scmp.lt.s32.totalorder %s25, 1
        %s321 = scalar_select %p320, %s25, 1
        %p322 = scmp.lt.s32.totalorder %s26, 0
        %s323 = scalar_select %p322, %s26, 0
        %s324 = sadd.s32 %s323, %s321
        %s325 = smul.addr %s324, 2
        %s326 = scalar_lea.vmem %s1, %s325
        %v327 = vld [vmem:[%s319] sm:$0xf]
        %v328 = vld [vmem:[%s4] sm:$0x3]
        %v329 = vld [vmem:[%s2] sm:$0x3]
        %331 = vset.pattern.permute.xlu0 0
        %332 = vperm.xlu0 %331, %v328
        %v333 = vpop.permute.xlu0 %332
        %vm335 = vcmask 31744
        %v337 = vsel %vm335, %v329, 0
        %vm339 = vcmask 1043456
        %v341 = vsel %vm339, %v327, 0
        %343 = vmatprep.subr.mxu0 0.0
        %344 = vmatpush1.msra.mxu0 0.0
        %345 = vmatprep.subr.mxu0 0.0
        %346 = vmatpush1.msra.mxu0 0.0
        %347 = vmatprep.subr.mxu0 0.0
        %348 = vmatpush1.msra.mxu0 0.0
        %349 = vmatprep.subr.mxu0 0.0
        %350 = vmatpush1.msra.mxu0 0.0
        %351 = vmatprep.subr.mxu0 0.0
        %352 = vmatpush1.msra.mxu0 0.0
        %353 = vmatprep.subr.mxu0 0.0
        %354 = vmatpush1.msra.mxu0 0.0
        %355 = vmatprep.subr.mxu0 0.0
        %356 = vmatpush1.msra.mxu0 0.0
        %357 = vmatprep.subr.mxu0 0.0
        %358 = vmatpush1.msra.mxu0 0.0
        %359 = vmatprep.subr.mxu0 0.0
        %360 = vmatpush1.msra.mxu0 0.0
        %361 = vmatprep.subr.mxu0 0.0
        %362 = vmatpush1.msra.mxu0 0.0
        %363 = vmatprep.subr.mxu0 0.0
        %364 = vmatpush1.msra.mxu0 0.0
        %365 = vmatprep.subr.mxu0 0.0
        %366 = vmatpush1.msra.mxu0 0.0
        %367 = vmatprep.subr.mxu0 0.0
        %368 = vmatpush1.msra.mxu0 0.0
        %369 = vmatprep.subr.mxu0 0.0
        %370 = vmatpush1.msra.mxu0 0.0
        %371 = vmatprep.subr.mxu0 0.0
        %372 = vmatpush1.msra.mxu0 0.0
        %373 = vmatprep.subr.mxu0 0.0
        %374 = vmatpush1.msra.mxu0 %v341
        %375 = vmatprep.subr.mxu0 0.0
        %376 = vmatpush2.msra.mxu0 0.0
        %377 = vmatprep.subr.mxu0 0.0
        %378 = vmatpush2.msra.mxu0 0.0
        %379 = vmatprep.subr.mxu0 0.0
        %380 = vmatpush2.msra.mxu0 0.0
        %381 = vmatprep.subr.mxu0 0.0
        %382 = vmatpush2.msra.mxu0 0.0
        %383 = vmatprep.subr.mxu0 0.0
        %384 = vmatpush2.msra.mxu0 0.0
        %385 = vmatprep.subr.mxu0 0.0
        %386 = vmatpush2.msra.mxu0 0.0
        %387 = vmatprep.subr.mxu0 0.0
        %388 = vmatpush2.msra.mxu0 0.0
        %389 = vmatprep.subr.mxu0 0.0
        %390 = vmatpush2.msra.mxu0 0.0
        %391 = vmatprep.subr.mxu0 0.0
        %392 = vmatpush2.msra.mxu0 0.0
        %393 = vmatprep.subr.mxu0 0.0
        %394 = vmatpush2.msra.mxu0 0.0
        %395 = vmatprep.subr.mxu0 0.0
        %396 = vmatpush2.msra.mxu0 0.0
        %397 = vmatprep.subr.mxu0 0.0
        %398 = vmatpush2.msra.mxu0 0.0
        %399 = vmatprep.subr.mxu0 0.0
        %400 = vmatpush2.msra.mxu0 0.0
        %401 = vmatprep.subr.mxu0 0.0
        %402 = vmatpush2.msra.mxu0 0.0
        %403 = vmatprep.subr.mxu0 0.0
        %404 = vmatpush2.msra.mxu0 0.0
        %405 = vmatprep.subr.mxu0 0.0
        %406 = vmatpush2.msra.mxu0 0.0
        %407 = vmatprep.mubr.f32.mxu0 0.0
        %408 = vmatmul.mubr.f32.gmra.mxu0 %v337
        %v409 = vpop.f32.mrf.mxu0
        %v410 = vadd.f32 %v333, %v409
        %v411 = vpop.f32.mrf.mxu0
        %412 = vdwg.mxu0
        %v413 = vld [vmem:[%s3] sm:$0x3]
        %v415 = vsel %vm335, %v413, 0
        %417 = vmatprep.subr.mxu0 0.0
        %418 = vmatpush1.msra.mxu0 0.0
        %419 = vmatprep.subr.mxu0 0.0
        %420 = vmatpush1.msra.mxu0 0.0
        %421 = vmatprep.subr.mxu0 0.0
        %422 = vmatpush1.msra.mxu0 0.0
        %423 = vmatprep.subr.mxu0 0.0
        %424 = vmatpush1.msra.mxu0 0.0
        %425 = vmatprep.subr.mxu0 0.0
        %426 = vmatpush1.msra.mxu0 0.0
        %427 = vmatprep.subr.mxu0 0.0
        %428 = vmatpush1.msra.mxu0 0.0
        %429 = vmatprep.subr.mxu0 0.0
        %430 = vmatpush1.msra.mxu0 0.0
        %431 = vmatprep.subr.mxu0 0.0
        %432 = vmatpush1.msra.mxu0 0.0
        %433 = vmatprep.subr.mxu0 0.0
        %434 = vmatpush1.msra.mxu0 0.0
        %435 = vmatprep.subr.mxu0 0.0
        %436 = vmatpush1.msra.mxu0 0.0
        %437 = vmatprep.subr.mxu0 0.0
        %438 = vmatpush1.msra.mxu0 0.0
        %439 = vmatprep.subr.mxu0 0.0
        %440 = vmatpush1.msra.mxu0 0.0
        %441 = vmatprep.subr.mxu0 0.0
        %442 = vmatpush1.msra.mxu0 0.0
        %443 = vmatprep.subr.mxu0 0.0
        %444 = vmatpush1.msra.mxu0 0.0
        %445 = vmatprep.subr.mxu0 0.0
        %446 = vmatpush1.msra.mxu0 0.0
        %447 = vmatprep.subr.mxu0 0.0
        %448 = vmatpush1.msra.mxu0 %v341
        %449 = vmatprep.subr.mxu0 0.0
        %450 = vmatpush2.msra.mxu0 0.0
        %451 = vmatprep.subr.mxu0 0.0
        %452 = vmatpush2.msra.mxu0 0.0
        %453 = vmatprep.subr.mxu0 0.0
        %454 = vmatpush2.msra.mxu0 0.0
        %455 = vmatprep.subr.mxu0 0.0
        %456 = vmatpush2.msra.mxu0 0.0
        %457 = vmatprep.subr.mxu0 0.0
        %458 = vmatpush2.msra.mxu0 0.0
        %459 = vmatprep.subr.mxu0 0.0
        %460 = vmatpush2.msra.mxu0 0.0
        %461 = vmatprep.subr.mxu0 0.0
        %462 = vmatpush2.msra.mxu0 0.0
        %463 = vmatprep.subr.mxu0 0.0
        %464 = vmatpush2.msra.mxu0 0.0
        %465 = vmatprep.subr.mxu0 0.0
        %466 = vmatpush2.msra.mxu0 0.0
        %467 = vmatprep.subr.mxu0 0.0
        %468 = vmatpush2.msra.mxu0 0.0
        %469 = vmatprep.subr.mxu0 0.0
        %470 = vmatpush2.msra.mxu0 0.0
        %471 = vmatprep.subr.mxu0 0.0
        %472 = vmatpush2.msra.mxu0 0.0
        %473 = vmatprep.subr.mxu0 0.0
        %474 = vmatpush2.msra.mxu0 0.0
        %475 = vmatprep.subr.mxu0 0.0
        %476 = vmatpush2.msra.mxu0 0.0
        %477 = vmatprep.subr.mxu0 0.0
        %478 = vmatpush2.msra.mxu0 0.0
        %479 = vmatprep.subr.mxu0 0.0
        %480 = vmatpush2.msra.mxu0 0.0
        %481 = vmatprep.mubr.f32.mxu0 0.0
        %482 = vmatmul.mubr.f32.gmra.mxu0 %v415
        %v483 = vpop.f32.mrf.mxu0
        %v484 = vadd.f32 %v333, %v483
        %v485 = vpop.f32.mrf.mxu0
        %486 = vdwg.mxu0
        %v487 = vld [vmem:[%s5] sm:$0xff]
        %v488 = vld [vmem:[%s6] sm:$0xff]
        %vm489 = vcmask 64512
        %v491 = vsel %vm489, %v484, 0
        %493 = vmatprep.subr.mxu0 0.0
        %494 = vmatpush1.msra.mxu0 0.0
        %495 = vmatprep.subr.mxu0 0.0
        %496 = vmatpush1.msra.mxu0 0.0
        %497 = vmatprep.subr.mxu0 0.0
        %498 = vmatpush1.msra.mxu0 0.0
        %499 = vmatprep.subr.mxu0 0.0
        %500 = vmatpush1.msra.mxu0 0.0
        %501 = vmatprep.subr.mxu0 0.0
        %502 = vmatpush1.msra.mxu0 0.0
        %503 = vmatprep.subr.mxu0 0.0
        %504 = vmatpush1.msra.mxu0 0.0
        %505 = vmatprep.subr.mxu0 0.0
        %506 = vmatpush1.msra.mxu0 0.0
        %507 = vmatprep.subr.mxu0 0.0
        %508 = vmatpush1.msra.mxu0 0.0
        %509 = vmatprep.subr.mxu0 0.0
        %510 = vmatpush1.msra.mxu0 0.0
        %511 = vmatprep.subr.mxu0 0.0
        %512 = vmatpush1.msra.mxu0 0.0
        %513 = vmatprep.subr.mxu0 0.0
        %514 = vmatpush1.msra.mxu0 0.0
        %515 = vmatprep.subr.mxu0 0.0
        %516 = vmatpush1.msra.mxu0 0.0
        %517 = vmatprep.subr.mxu0 0.0
        %518 = vmatpush1.msra.mxu0 0.0
        %519 = vmatprep.subr.mxu0 0.0
        %520 = vmatpush1.msra.mxu0 0.0
        %521 = vmatprep.subr.mxu0 0.0
        %522 = vmatpush1.msra.mxu0 0.0
        %523 = vmatprep.subr.mxu0 0.0
        %524 = vmatpush1.msra.mxu0 %v488
        %525 = vmatprep.subr.mxu0 0.0
        %526 = vmatpush2.msra.mxu0 0.0
        %527 = vmatprep.subr.mxu0 0.0
        %528 = vmatpush2.msra.mxu0 0.0
        %529 = vmatprep.subr.mxu0 0.0
        %530 = vmatpush2.msra.mxu0 0.0
        %531 = vmatprep.subr.mxu0 0.0
        %532 = vmatpush2.msra.mxu0 0.0
        %533 = vmatprep.subr.mxu0 0.0
        %534 = vmatpush2.msra.mxu0 0.0
        %535 = vmatprep.subr.mxu0 0.0
        %536 = vmatpush2.msra.mxu0 0.0
        %537 = vmatprep.subr.mxu0 0.0
        %538 = vmatpush2.msra.mxu0 0.0
        %539 = vmatprep.subr.mxu0 0.0
        %540 = vmatpush2.msra.mxu0 0.0
        %541 = vmatprep.subr.mxu0 0.0
        %542 = vmatpush2.msra.mxu0 0.0
        %543 = vmatprep.subr.mxu0 0.0
        %544 = vmatpush2.msra.mxu0 0.0
        %545 = vmatprep.subr.mxu0 0.0
        %546 = vmatpush2.msra.mxu0 0.0
        %547 = vmatprep.subr.mxu0 0.0
        %548 = vmatpush2.msra.mxu0 0.0
        %549 = vmatprep.subr.mxu0 0.0
        %550 = vmatpush2.msra.mxu0 0.0
        %551 = vmatprep.subr.mxu0 0.0
        %552 = vmatpush2.msra.mxu0 0.0
        %553 = vmatprep.subr.mxu0 0.0
        %554 = vmatpush2.msra.mxu0 0.0
        %555 = vmatprep.subr.mxu0 0.0
        %556 = vmatpush2.msra.mxu0 0.0
        %557 = vmatprep.mubr.f32.mxu0 0.0
        %558 = vmatmul.mubr.f32.gmra.mxu0 %v491
        %v559 = vpop.f32.mrf.mxu0
        %v560 = vadd.f32 0.0, %v559
        %v561 = vpop.f32.mrf.mxu0
        %562 = vdwg.mxu0
        %v564 = vsel %vm489, %v410, 0
        %566 = vmatprep.subr.mxu0 0.0
        %567 = vmatpush1.msra.mxu0 0.0
        %568 = vmatprep.subr.mxu0 0.0
        %569 = vmatpush1.msra.mxu0 0.0
        %570 = vmatprep.subr.mxu0 0.0
        %571 = vmatpush1.msra.mxu0 0.0
        %572 = vmatprep.subr.mxu0 0.0
        %573 = vmatpush1.msra.mxu0 0.0
        %574 = vmatprep.subr.mxu0 0.0
        %575 = vmatpush1.msra.mxu0 0.0
        %576 = vmatprep.subr.mxu0 0.0
        %577 = vmatpush1.msra.mxu0 0.0
        %578 = vmatprep.subr.mxu0 0.0
        %579 = vmatpush1.msra.mxu0 0.0
        %580 = vmatprep.subr.mxu0 0.0
        %581 = vmatpush1.msra.mxu0 0.0
        %582 = vmatprep.subr.mxu0 0.0
        %583 = vmatpush1.msra.mxu0 0.0
        %584 = vmatprep.subr.mxu0 0.0
        %585 = vmatpush1.msra.mxu0 0.0
        %586 = vmatprep.subr.mxu0 0.0
        %587 = vmatpush1.msra.mxu0 0.0
        %588 = vmatprep.subr.mxu0 0.0
        %589 = vmatpush1.msra.mxu0 0.0
        %590 = vmatprep.subr.mxu0 0.0
        %591 = vmatpush1.msra.mxu0 0.0
        %592 = vmatprep.subr.mxu0 0.0
        %593 = vmatpush1.msra.mxu0 0.0
        %594 = vmatprep.subr.mxu0 0.0
        %595 = vmatpush1.msra.mxu0 0.0
        %596 = vmatprep.subr.mxu0 0.0
        %597 = vmatpush1.msra.mxu0 %v487
        %598 = vmatprep.subr.mxu0 0.0
        %599 = vmatpush2.msra.mxu0 0.0
        %600 = vmatprep.subr.mxu0 0.0
        %601 = vmatpush2.msra.mxu0 0.0
        %602 = vmatprep.subr.mxu0 0.0
        %603 = vmatpush2.msra.mxu0 0.0
        %604 = vmatprep.subr.mxu0 0.0
        %605 = vmatpush2.msra.mxu0 0.0
        %606 = vmatprep.subr.mxu0 0.0
        %607 = vmatpush2.msra.mxu0 0.0
        %608 = vmatprep.subr.mxu0 0.0
        %609 = vmatpush2.msra.mxu0 0.0
        %610 = vmatprep.subr.mxu0 0.0
        %611 = vmatpush2.msra.mxu0 0.0
        %612 = vmatprep.subr.mxu0 0.0
        %613 = vmatpush2.msra.mxu0 0.0
        %614 = vmatprep.subr.mxu0 0.0
        %615 = vmatpush2.msra.mxu0 0.0
        %616 = vmatprep.subr.mxu0 0.0
        %617 = vmatpush2.msra.mxu0 0.0
        %618 = vmatprep.subr.mxu0 0.0
        %619 = vmatpush2.msra.mxu0 0.0
        %620 = vmatprep.subr.mxu0 0.0
        %621 = vmatpush2.msra.mxu0 0.0
        %622 = vmatprep.subr.mxu0 0.0
        %623 = vmatpush2.msra.mxu0 0.0
        %624 = vmatprep.subr.mxu0 0.0
        %625 = vmatpush2.msra.mxu0 0.0
        %626 = vmatprep.subr.mxu0 0.0
        %627 = vmatpush2.msra.mxu0 0.0
        %628 = vmatprep.subr.mxu0 0.0
        %629 = vmatpush2.msra.mxu0 0.0
        %630 = vmatprep.mubr.f32.mxu0 0.0
        %631 = vmatmul.mubr.f32.gmra.mxu0 %v564
        %v632 = vpop.f32.mrf.mxu0
        %v633 = vadd.f32 %v560, %v632
        %v634 = vpop.f32.mrf.mxu0
        %635 = vdwg.mxu0
        %v636 = vld [vmem:[%s326] sm:$0x3]
        %v637 = vadd.f32 %v636, %v633
        %vm638 = vcmask 123904
        %639 = vst.msk [vmem:[%s312] sm:$0x3] %vm638, %v637
        %s640 = sand.u32 %s204, 1
        %s641 = scalar_lea.sflag [#allocation3], %s640
        %s642 = sand.u32 %s204, 1
        %s643 = smul.addr %s642, 2
        %s644 = scalar_lea.vmem [#allocation2], %s643
        // Predicated region
        $region49: #{up_forward.1} parent=47 // pred_check
          %p645 = pneg %p214
        $region50: #{up_forward.1} parent=47 // pred_check_branch
          %647 = sbr.rel (%p645) target = $region52
        $region51: #{up_forward.1} parent=47 // pred_region
          %s649 = ssub.s32 32, 32
          %650 = vsyncadd %s641, %s649
          %s651 = sadd.s32 %s26, %s25
          %s652 = smul.addr %s651, 32
          %s653 = scalar_lea.hbm %s7, %s652
          %s655 = sshll.u32 %s644, 4
          %s656 = int_to_ptr.vmem [resolvable:$true] %s655
          %658 = dma.vmem_to_hbm [thread:$0]  %s656, 32, %s653, %s641
        $region52: #{up_forward.1} parent=47 // pred_fallthru
          _
      $region48: #{up_forward.1} parent=5 // pred_fallthru
        _
      %p659 = scmp.le.s32.totalorder 2, %s16
      // Predicated region
      $region53: #{up_forward.1} parent=5 // pred_check
        %p660 = pneg %p659
      $region54: #{up_forward.1} parent=5 // pred_check_branch
        %662 = sbr.rel (%p660) target = $region56
      $region55: #{up_forward.1} parent=5 // pred_region
        %s663 = ssub.s32 %s16, 2
        // Predicated region
        $region57: #{up_forward.1} parent=55 // pred_check
          %p664 = pneg %p220
        $region58: #{up_forward.1} parent=55 // pred_check_branch
          %666 = sbr.rel (%p664) target = $region60
        $region59: #{up_forward.1} parent=55 // pred_region
          %s667 = sand.u32 %s205, 1
          %s668 = scalar_lea.sflag [#allocation3], %s667
          %s669 = sand.u32 %s205, 1
          %s670 = smul.addr %s669, 2
          %s671 = scalar_lea.vmem [#allocation2], %s670
          %672 = dma.done %s668, 32
        $region60: #{up_forward.1} parent=55 // pred_fallthru
          _
      $region56: #{up_forward.1} parent=5 // pred_fallthru
        _
    $region6: #{up_forward.1} parent=1 // loop_footer
      %s20 = sadd.s32 1, %s16
    $region7: #{up_forward.1} parent=1 // loop_footer_branch
      %15 = sbr.rel target = $region3
    $region8: #{up_forward.1} parent=1 // loop_exit
      _
    %673 = vsyncpa [#allocation3], 1
    %s674 = scalar_lea.sflag [#allocation3], 1
    %675 = vsyncpa %s674, 1

</llo_original>
